<compile_context>
chip_gen: v7x
topology: tpu7x:2x2x1
jax: 0.10.0
libtpu: 0.0.40
codegen_flags: <defaults>
</compile_context>

<pallas_src>
import jax
import jax.numpy as jnp
from jax.experimental import pallas as pl
from jax.experimental.pallas import tpu as pltpu


_NUM_SPLITS = 2       # leading "parallel" grid axis (2 TCs on v7x; loop of 2 elsewhere)
_MAX_TILE_ROWS = 512  # rows of 128 joints per grid step (~768 KiB/block at f32)


def _cdiv(a, b):
    return (a + b - 1) // b


def _round_up(a, b):
    return _cdiv(a, b) * b


def _mpjpe_kernel(n_ref, p_ref, t_ref, out_ref, acc_ref):
    c = pl.program_id(0)                 # core-split index
    i = pl.program_id(1)                 # tile index within this split
    tiles_per_split = pl.num_programs(1)
    rt = p_ref.shape[1]                  # tile rows (multiple of 8)

    @pl.when(i == 0)
    def _init():
        acc_ref[0] = jnp.float32(0.0)    # running sum of per-joint distances
        acc_ref[1] = jnp.float32(0.0)    # running count of valid joints

    # Load the three coordinate slabs; upcast in-kernel so bf16 inputs only
    # pay half the HBM bytes and widen once resident in VMEM.
    p0 = p_ref[0].astype(jnp.float32)
    p1 = p_ref[1].astype(jnp.float32)
    p2 = p_ref[2].astype(jnp.float32)
    t0 = t_ref[0].astype(jnp.float32)
    t1 = t_ref[1].astype(jnp.float32)
    t2 = t_ref[2].astype(jnp.float32)

    # Global joint index of every (sublane, lane) position -> mask out padding.
    tile = c * tiles_per_split + i
    row = jax.lax.broadcasted_iota(jnp.int32, (rt, 128), 0)
    col = jax.lax.broadcasted_iota(jnp.int32, (rt, 128), 1)
    gidx = (tile * rt + row) * 128 + col
    in_range = gidx < n_ref[0]

    # valid joint = inside the real batch and no NaN in any target coordinate
    has_nan = jnp.isnan(t0) | jnp.isnan(t1) | jnp.isnan(t2)
    valid = in_range & jnp.logical_not(has_nan)
    valid_f = valid.astype(jnp.float32)

    # target[~valid] = 0 so NaNs don't poison the norm (matches the module);
    # sqrt goes to the EUP slot, effectively free in this HBM-bound kernel.
    d0 = p0 - jnp.where(valid, t0, 0.0)
    d1 = p1 - jnp.where(valid, t1, 0.0)
    d2 = p2 - jnp.where(valid, t2, 0.0)
    dist = jnp.sqrt(d0 * d0 + d1 * d1 + d2 * d2) * valid_f

    acc_ref[0] += jnp.sum(dist)
    acc_ref[1] += jnp.sum(valid_f)

    @pl.when(i == tiles_per_split - 1)
    def _finalize():
        # sublane 0 <- partial distance sum, sublane 1 <- partial valid count
        sub = jax.lax.broadcasted_iota(jnp.int32, (1, 8, 128), 1)
        blk = jnp.where(sub == 0, acc_ref[0],
                        jnp.where(sub == 1, acc_ref[1], 0.0))
        out_ref[...] = blk.astype(jnp.float32)


def mpjpe_loss(pred, target):
    """pred, target: (batch, num_joints, 3) -> scalar float32 (MPJPE * 100)."""
    B, J, C = pred.shape
    assert C == 3 and target.shape == pred.shape
    N = B * J

    R = _cdiv(N, 128)                                        # rows of 128 joints
    Rt = min(_MAX_TILE_ROWS, _round_up(_cdiv(R, _NUM_SPLITS), 8))
    T = _cdiv(R, _NUM_SPLITS * Rt)                           # tiles per split
    Rpad = _NUM_SPLITS * T * Rt
    total = Rpad * 128

    def relayout(x):
        x = x.reshape(N, 3)
        x = jnp.pad(x, ((0, total - N), (0, 0)))             # zero pad, masked in-kernel
        return x.reshape(Rpad, 128, 3).transpose(2, 0, 1)    # (3, Rpad, 128)

    p3 = relayout(pred)
    t3 = relayout(target)
    n_arr = jnp.array([N], dtype=jnp.int32)

    grid_spec = pltpu.PrefetchScalarGridSpec(
        num_scalar_prefetch=1,
        grid=(_NUM_SPLITS, T),
        in_specs=[
            pl.BlockSpec((3, Rt, 128), lambda c, i, n: (0, c * T + i, 0)),
            pl.BlockSpec((3, Rt, 128), lambda c, i, n: (0, c * T + i, 0)),
        ],
        out_specs=pl.BlockSpec((1, 8, 128), lambda c, i, n: (c, 0, 0)),
        scratch_shapes=[pltpu.SMEM((2,), jnp.float32)],
    )

    partials = pl.pallas_call(
        _mpjpe_kernel,
        out_shape=jax.ShapeDtypeStruct((_NUM_SPLITS, 8, 128), jnp.float32),
        grid_spec=grid_spec,
        compiler_params=pltpu.CompilerParams(
            dimension_semantics=("parallel", "arbitrary")),
    )(n_arr, p3, t3)

    sum_dist = jnp.sum(partials[:, 0, 0])
    count = jnp.sum(partials[:, 1, 0])
    return sum_dist / (count + 1e-8) * 100.0


if __name__ == "__main__":
    key = jax.random.PRNGKey(0)
    k1, k2 = jax.random.split(key)

    B, J = 4, 17  # small shapes consistent with (batch, num_joints, 3)
    pred = jax.random.normal(k1, (B, J, 3), dtype=jnp.float32)
    target = jax.random.normal(k2, (B, J, 3), dtype=jnp.float32)

    # make a few joints invalid via NaN (as the module expects)
    target = target.at[0, 3, 1].set(jnp.nan)
    target = target.at[2, 5, :].set(jnp.nan)
    target = target.at[3, 0, 2].set(jnp.nan)

    out = jax.block_until_ready(mpjpe_loss(pred, target))

    # pure-JAX reference of the PyTorch forward
    valid = ~jnp.isnan(target).any(axis=-1)
    tz = jnp.where(valid[..., None], target, 0.0)
    dist = jnp.linalg.norm(pred - tz, axis=-1) * valid
    ref = dist.sum() / (valid.sum() + 1e-8) * 100.0

    assert jnp.allclose(out, ref, rtol=1e-5, atol=1e-5), (out, ref)
    print("KERNEL_OK")
</pallas_src>

<mosaic_0001>
module attributes {stable_mosaic.version = 11 : i64} {
  func.func @_mpjpe_kernel(%arg0: i32, %arg1: i32, %arg2: memref<1xi32, #tpu.memory_space<smem>>, %arg3: memref<3x8x128xf32, #tpu.memory_space<vmem>>, %arg4: memref<3x8x128xf32, #tpu.memory_space<vmem>>, %arg5: memref<1x8x128xf32, #tpu.memory_space<vmem>>, %arg6: memref<2xf32, #tpu.memory_space<smem>>) attributes {dimension_semantics = [#tpu.dimension_semantics<parallel>, #tpu.dimension_semantics<arbitrary>], iteration_bounds = array<i64: 2, 1>, scalar_prefetch = 1 : i64, scratch_operands = 1 : i64, tpu.core_type = #tpu.core_type<tc>, window_params = [{transform_indices = @transform_0, window_bounds = array<i64: 3, 8, 128>}, {transform_indices = @transform_1, window_bounds = array<i64: 3, 8, 128>}, {transform_indices = @transform_2, window_bounds = array<i64: 1, 8, 128>}]} {
    %c0_i32 = arith.constant 0 : i32
    %0 = arith.cmpi eq, %arg1, %c0_i32 : i32
    %1 = arith.extui %0 : i1 to i32
    %c0_i32_0 = arith.constant 0 : i32
    %2 = arith.cmpi ne, %1, %c0_i32_0 : i32
    scf.if %2 {
      %cst_28 = arith.constant 0.000000e+00 : f32
      %c0_29 = arith.constant 0 : index
      %70 = memref.load %arg6[%c0_29] : memref<2xf32, #tpu.memory_space<smem>>
      memref.store %cst_28, %arg6[%c0_29] : memref<2xf32, #tpu.memory_space<smem>>
      %cst_30 = arith.constant 0.000000e+00 : f32
      %c1_31 = arith.constant 1 : index
      %71 = memref.load %arg6[%c1_31] : memref<2xf32, #tpu.memory_space<smem>>
      memref.store %cst_30, %arg6[%c1_31] : memref<2xf32, #tpu.memory_space<smem>>
    } else {
    }
    %c0 = arith.constant 0 : index
    %c0_1 = arith.constant 0 : index
    %c0_2 = arith.constant 0 : index
    %3 = vector.load %arg3[%c0, %c0_1, %c0_2] : memref<3x8x128xf32, #tpu.memory_space<vmem>>, vector<1x8x128xf32>
    %4 = vector.shape_cast %3 : vector<1x8x128xf32> to vector<8x128xf32>
    %c1 = arith.constant 1 : index
    %c0_3 = arith.constant 0 : index
    %c0_4 = arith.constant 0 : index
    %5 = vector.load %arg3[%c1, %c0_3, %c0_4] : memref<3x8x128xf32, #tpu.memory_space<vmem>>, vector<1x8x128xf32>
    %6 = vector.shape_cast %5 : vector<1x8x128xf32> to vector<8x128xf32>
    %c2 = arith.constant 2 : index
    %c0_5 = arith.constant 0 : index
    %c0_6 = arith.constant 0 : index
    %7 = vector.load %arg3[%c2, %c0_5, %c0_6] : memref<3x8x128xf32, #tpu.memory_space<vmem>>, vector<1x8x128xf32>
    %8 = vector.shape_cast %7 : vector<1x8x128xf32> to vector<8x128xf32>
    %c0_7 = arith.constant 0 : index
    %c0_8 = arith.constant 0 : index
    %c0_9 = arith.constant 0 : index
    %9 = vector.load %arg4[%c0_7, %c0_8, %c0_9] : memref<3x8x128xf32, #tpu.memory_space<vmem>>, vector<1x8x128xf32>
    %10 = vector.shape_cast %9 : vector<1x8x128xf32> to vector<8x128xf32>
    %c1_10 = arith.constant 1 : index
    %c0_11 = arith.constant 0 : index
    %c0_12 = arith.constant 0 : index
    %11 = vector.load %arg4[%c1_10, %c0_11, %c0_12] : memref<3x8x128xf32, #tpu.memory_space<vmem>>, vector<1x8x128xf32>
    %12 = vector.shape_cast %11 : vector<1x8x128xf32> to vector<8x128xf32>
    %c2_13 = arith.constant 2 : index
    %c0_14 = arith.constant 0 : index
    %c0_15 = arith.constant 0 : index
    %13 = vector.load %arg4[%c2_13, %c0_14, %c0_15] : memref<3x8x128xf32, #tpu.memory_space<vmem>>, vector<1x8x128xf32>
    %14 = vector.shape_cast %13 : vector<1x8x128xf32> to vector<8x128xf32>
    %c1_i32 = arith.constant 1 : i32
    %15 = arith.muli %arg0, %c1_i32 : i32
    %16 = arith.addi %15, %arg1 : i32
    %17 = tpu.iota {dimensions = array<i32: 0>} : vector<8x128xi32>
    %18 = tpu.iota {dimensions = array<i32: 1>} : vector<8x128xi32>
    %c8_i32 = arith.constant 8 : i32
    %19 = arith.muli %16, %c8_i32 : i32
    %20 = vector.broadcast %19 : i32 to vector<8x128xi32>
    %21 = arith.addi %20, %17 : vector<8x128xi32>
    %c128_i32 = arith.constant 128 : i32
    %22 = vector.broadcast %c128_i32 : i32 to vector<8x128xi32>
    %23 = arith.muli %21, %22 : vector<8x128xi32>
    %24 = arith.addi %23, %18 : vector<8x128xi32>
    %c0_16 = arith.constant 0 : index
    %25 = memref.load %arg2[%c0_16] : memref<1xi32, #tpu.memory_space<smem>>
    %26 = vector.broadcast %25 : i32 to vector<8x128xi32>
    %27 = arith.cmpi slt, %24, %26 : vector<8x128xi32>
    %28 = arith.cmpf one, %10, %10 : vector<8x128xf32>
    %29 = arith.cmpf one, %12, %12 : vector<8x128xf32>
    %30 = arith.ori %28, %29 : vector<8x128xi1>
    %31 = arith.cmpf one, %14, %14 : vector<8x128xf32>
    %32 = arith.ori %30, %31 : vector<8x128xi1>
    %cst = arith.constant dense<true> : vector<8x128xi1>
    %33 = arith.xori %32, %cst : vector<8x128xi1>
    %34 = arith.andi %27, %33 : vector<8x128xi1>
    %35 = arith.extui %34 : vector<8x128xi1> to vector<8x128xi32>
    %36 = arith.sitofp %35 : vector<8x128xi32> to vector<8x128xf32>
    %cst_17 = arith.constant 0.000000e+00 : f32
    %37 = vector.broadcast %cst_17 : f32 to vector<8x128xf32>
    %38 = arith.select %34, %10, %37 : vector<8x128xi1>, vector<8x128xf32>
    %39 = arith.subf %4, %38 : vector<8x128xf32>
    %cst_18 = arith.constant 0.000000e+00 : f32
    %40 = vector.broadcast %cst_18 : f32 to vector<8x128xf32>
    %41 = arith.select %34, %12, %40 : vector<8x128xi1>, vector<8x128xf32>
    %42 = arith.subf %6, %41 : vector<8x128xf32>
    %cst_19 = arith.constant 0.000000e+00 : f32
    %43 = vector.broadcast %cst_19 : f32 to vector<8x128xf32>
    %44 = arith.select %34, %14, %43 : vector<8x128xi1>, vector<8x128xf32>
    %45 = arith.subf %8, %44 : vector<8x128xf32>
    %46 = arith.mulf %39, %39 : vector<8x128xf32>
    %47 = arith.mulf %42, %42 : vector<8x128xf32>
    %48 = arith.addf %46, %47 : vector<8x128xf32>
    %49 = arith.mulf %45, %45 : vector<8x128xf32>
    %50 = arith.addf %48, %49 : vector<8x128xf32>
    %51 = math.sqrt %50 : vector<8x128xf32>
    %52 = arith.mulf %51, %36 : vector<8x128xf32>
    %c0_20 = arith.constant 0 : index
    %53 = memref.load %arg6[%c0_20] : memref<2xf32, #tpu.memory_space<smem>>
    %54 = vector.shape_cast %52 : vector<8x128xf32> to vector<1x8x128xf32>
    %cst_21 = arith.constant dense<0.000000e+00> : vector<1xf32>
    %55 = vector.multi_reduction <add>, %54, %cst_21 [1, 2] : vector<1x8x128xf32> to vector<1xf32>
    %56 = vector.shape_cast %55 : vector<1xf32> to vector<1x1x1xf32>
    %57 = vector.extract %56[0, 0, 0] : f32 from vector<1x1x1xf32>
    %58 = arith.addf %53, %57 : f32
    %c0_22 = arith.constant 0 : index
    %59 = memref.load %arg6[%c0_22] : memref<2xf32, #tpu.memory_space<smem>>
    memref.store %58, %arg6[%c0_22] : memref<2xf32, #tpu.memory_space<smem>>
    %c1_23 = arith.constant 1 : index
    %60 = memref.load %arg6[%c1_23] : memref<2xf32, #tpu.memory_space<smem>>
    %61 = vector.shape_cast %36 : vector<8x128xf32> to vector<1x8x128xf32>
    %cst_24 = arith.constant dense<0.000000e+00> : vector<1xf32>
    %62 = vector.multi_reduction <add>, %61, %cst_24 [1, 2] : vector<1x8x128xf32> to vector<1xf32>
    %63 = vector.shape_cast %62 : vector<1xf32> to vector<1x1x1xf32>
    %64 = vector.extract %63[0, 0, 0] : f32 from vector<1x1x1xf32>
    %65 = arith.addf %60, %64 : f32
    %c1_25 = arith.constant 1 : index
    %66 = memref.load %arg6[%c1_25] : memref<2xf32, #tpu.memory_space<smem>>
    memref.store %65, %arg6[%c1_25] : memref<2xf32, #tpu.memory_space<smem>>
    %c0_i32_26 = arith.constant 0 : i32
    %67 = arith.cmpi eq, %arg1, %c0_i32_26 : i32
    %68 = arith.extui %67 : i1 to i32
    %c0_i32_27 = arith.constant 0 : i32
    %69 = arith.cmpi ne, %68, %c0_i32_27 : i32
    scf.if %69 {
      %70 = tpu.iota {dimensions = array<i32: 1>} : vector<1x8x128xi32>
      %c0_i32_28 = arith.constant 0 : i32
      %71 = vector.broadcast %c0_i32_28 : i32 to vector<1x8x128xi32>
      %72 = arith.cmpi eq, %70, %71 : vector<1x8x128xi32>
      %c0_29 = arith.constant 0 : index
      %73 = memref.load %arg6[%c0_29] : memref<2xf32, #tpu.memory_space<smem>>
      %c1_i32_30 = arith.constant 1 : i32
      %74 = vector.broadcast %c1_i32_30 : i32 to vector<1x8x128xi32>
      %75 = arith.cmpi eq, %70, %74 : vector<1x8x128xi32>
      %c1_31 = arith.constant 1 : index
      %76 = memref.load %arg6[%c1_31] : memref<2xf32, #tpu.memory_space<smem>>
      %cst_32 = arith.constant 0.000000e+00 : f32
      %77 = vector.broadcast %76 : f32 to vector<1x8x128xf32>
      %78 = vector.broadcast %cst_32 : f32 to vector<1x8x128xf32>
      %79 = arith.select %75, %77, %78 : vector<1x8x128xi1>, vector<1x8x128xf32>
      %80 = vector.broadcast %73 : f32 to vector<1x8x128xf32>
      %81 = arith.select %72, %80, %79 : vector<1x8x128xi1>, vector<1x8x128xf32>
      %c0_33 = arith.constant 0 : index
      %c0_34 = arith.constant 0 : index
      %c0_35 = arith.constant 0 : index
      %82 = vector.load %arg5[%c0_33, %c0_34, %c0_35] : memref<1x8x128xf32, #tpu.memory_space<vmem>>, vector<1x8x128xf32>
      tpu.vector_store %arg5[%c0_33, %c0_34, %c0_35], %81 {strides = array<i32>} : memref<1x8x128xf32, #tpu.memory_space<vmem>>, vector<1x8x128xf32>,
    } else {
    }
    return
  }
  func.func @transform_0(%arg0: i32, %arg1: i32, %arg2: memref<1xi32, #tpu.memory_space<smem>>) -> (i32, i32, i32) {
    %c1_i32 = arith.constant 1 : i32
    %0 = arith.muli %arg0, %c1_i32 : i32
    %1 = arith.addi %0, %arg1 : i32
    %c0_i32 = arith.constant 0 : i32
    %c0_i32_0 = arith.constant 0 : i32
    %c0_i32_1 = arith.constant 0 : i32
    return %c0_i32, %1, %c0_i32_0 : i32, i32, i32
  }
  func.func @transform_1(%arg0: i32, %arg1: i32, %arg2: memref<1xi32, #tpu.memory_space<smem>>) -> (i32, i32, i32) {
    %c1_i32 = arith.constant 1 : i32
    %0 = arith.muli %arg0, %c1_i32 : i32
    %1 = arith.addi %0, %arg1 : i32
    %c0_i32 = arith.constant 0 : i32
    %c0_i32_0 = arith.constant 0 : i32
    %c0_i32_1 = arith.constant 0 : i32
    return %c0_i32, %1, %c0_i32_0 : i32, i32, i32
  }
  func.func @transform_2(%arg0: i32, %arg1: i32, %arg2: memref<1xi32, #tpu.memory_space<smem>>) -> (i32, i32, i32) {
    %c0_i32 = arith.constant 0 : i32
    %c0_i32_0 = arith.constant 0 : i32
    %c0_i32_1 = arith.constant 0 : i32
    return %arg0, %c0_i32, %c0_i32_0 : i32, i32, i32
  }
}

</mosaic_0001>

<llo_original>
// kernel: tpu_custom_call.1
$region0: #{tpu_custom_call.1}
  #allocation0 [shape = 'u32[]', space=smem, size = 0x4, offset = 0x4, fixed_abs, tag = 'smem constant byte address 0x4 - core index']
  #allocation1 [shape = 'u32[144,128]{1,0:T(1,128)}', space=vmem, size = 0x12000, scoped, tag = 'internal scratch']
  #allocation2 [shape = 'f32[2]{0:T(128)}', space=smem, size = 0x200, scoped, tag = 'scratch operand']
  #allocation3 [shape = 's32[1]{0}', space=sflag, size = 0x4, scoped, tag = 'scoped memory for tpu_custom_call.1']
  #allocation4 [shape = 's32[1]{0:T(128)S(6)}', space=smem, size = 0x200, scoped, tag = 'prefetched SMEM operand 0']
  %s0 = inlined_call_operand.<no memory space> [shape: s32[1], index: 0, kind: input, shape index: {}]
  %s1 = inlined_call_operand.hbm [shape: f32[3,16,128], index: 1, kind: input, shape index: {}]
  %s2 = inlined_call_operand.hbm [shape: f32[3,16,128], index: 2, kind: input, shape index: {}]
  %s3 = inlined_call_operand.hbm [shape: f32[2,8,128], index: 3, kind: output, shape index: {}]
  %s4 = sld [smem:[#allocation0]]
  $region57: #{tpu_custom_call.1} parent=0
    _
  %s6 = ssub.s32 1, %s4
  %s7 = scalar_select 0, %s6, %s4
  %8 = sst [smem:[#allocation4]] %s0
  $region1: #{tpu_custom_call.1} parent=0
    #allocation5 [shape = 'u8[24576]{0}', space=vmem, size = 0x6000, scoped, tag = 'input window, operand 1']
    #allocation6 [shape = 's32[2]{0}', space=sflag, size = 0x8, scoped, tag = 'scoped memory for tpu_custom_call.1']
    #allocation7 [shape = 's32[2]{0}', space=sflag, size = 0x8, scoped, tag = 'scoped memory for tpu_custom_call.1']
    #allocation8 [shape = 'u8[24576]{0}', space=vmem, size = 0x6000, scoped, tag = 'input window, operand 2']
    #allocation9 [shape = 's32[2]{0}', space=sflag, size = 0x8, scoped, tag = 'scoped memory for tpu_custom_call.1']
    #allocation10 [shape = 'u8[8192]{0}', space=vmem, size = 0x2000, scoped, tag = 'output window, operand 0']
    %9 = vsyncpa [#allocation6], 0
    %s10 = scalar_lea.sflag [#allocation6], 1
    %11 = vsyncpa %s10, 0
    %12 = vsyncpa [#allocation9], 0
    %s13 = scalar_lea.sflag [#allocation9], 1
    %14 = vsyncpa %s13, 0
    %15 = vsyncpa [#allocation7], 0
    %s16 = scalar_lea.sflag [#allocation7], 1
    %17 = vsyncpa %s16, 0
    loop: start=0, step=1, limit=4
    $region2: #{tpu_custom_call.1} parent=1 // loop_pre_header
      _
    $region3: #{tpu_custom_call.1} parent=1 // loop_header
      %s19 = sphi 0, %s23
      %p20 = scmp.ge.s32.totalorder %s19, 4
      %s26 = sphi 0, %s38
      %s27 = sphi 0, %s34
      %s28 = sphi 0, %s26
      %s29 = sphi 0, %s27
      %s30 = sphi 0, %s28
      %s31 = sphi 0, %s29
      %s43 = sphi 0, %s45
      %s46 = sphi 0, %s43
      %s47 = sphi 0, %s46
      %s63 = sphi 0, %s47
      %s71 = sphi 0, %s73
      %s74 = sphi 0, %s71
      %s75 = sphi 0, %s74
      %s91 = sphi 0, %s75
      %s97 = sphi 0, %s99
      %s100 = sphi 0, %s97
      %s101 = sphi 0, %s100
      %s117 = sphi 0, %s101
    $region4: #{tpu_custom_call.1} parent=1 // loop_header_branch
      %22 = sbr.rel (%p20) target = $region8
    $region5: #{tpu_custom_call.1} parent=1 // loop_body
      %s24 = ssub.s32 %s19, 1
      %s25 = ssub.s32 %s19, 2
      %s32 = sadd.s32 1, %s27
      %p33 = scmp.ge.s32.totalorder %s32, 1
      %s34 = scalar_select %p33, 0, %s32
      %s35 = sadd.s32 1, %s26
      %s36 = scalar_select %p33, %s35, %s26
      %p37 = scmp.ge.s32.totalorder %s36, 2
      %s38 = scalar_select %p37, 0, %s36
      %s39 = sadd.s32 %s26, %s27
      %s40 = sadd.s32 %s38, %s34
      %s41 = ssub.s32 %s39, %s40
      %p42 = scmp.eq.s32.totalorder %s41, 0
      %s44 = sadd.s32 %s43, 1
      %s45 = scalar_select %p42, %s43, %s44
      %p48 = pneg %p42
      %p49 = scmp.eq.s32.totalorder %s19, 1
      %p50 = por %p48, %p49
      %p51 = scmp.ne.s32.totalorder %s43, %s46
      %p52 = scmp.eq.s32.totalorder %s19, 0
      %p53 = por %p51, %p52
      %p54 = scmp.ne.s32.totalorder %s43, %s46
      %p55 = scmp.eq.s32.totalorder %s24, 1
      %p56 = por %p54, %p55
      %p57 = scmp.ne.s32.totalorder %s46, %s47
      %p58 = scmp.eq.s32.totalorder %s24, 0
      %p59 = por %p57, %p58
      %p60 = scmp.ne.s32.totalorder %s46, %s47
      %p61 = scmp.eq.s32.totalorder %s25, 1
      %p62 = por %p60, %p61
      %p64 = scmp.ne.s32.totalorder %s47, %s63
      %p65 = scmp.eq.s32.totalorder %s25, 0
      %p66 = por %p64, %p65
      %s67 = sadd.s32 %s26, %s27
      %s68 = sadd.s32 %s38, %s34
      %s69 = ssub.s32 %s67, %s68
      %p70 = scmp.eq.s32.totalorder %s69, 0
      %s72 = sadd.s32 %s71, 1
      %s73 = scalar_select %p70, %s71, %s72
      %p76 = pneg %p70
      %p77 = scmp.eq.s32.totalorder %s19, 1
      %p78 = por %p76, %p77
      %p79 = scmp.ne.s32.totalorder %s71, %s74
      %p80 = scmp.eq.s32.totalorder %s19, 0
      %p81 = por %p79, %p80
      %p82 = scmp.ne.s32.totalorder %s71, %s74
      %p83 = scmp.eq.s32.totalorder %s24, 1
      %p84 = por %p82, %p83
      %p85 = scmp.ne.s32.totalorder %s74, %s75
      %p86 = scmp.eq.s32.totalorder %s24, 0
      %p87 = por %p85, %p86
      %p88 = scmp.ne.s32.totalorder %s74, %s75
      %p89 = scmp.eq.s32.totalorder %s25, 1
      %p90 = por %p88, %p89
      %p92 = scmp.ne.s32.totalorder %s75, %s91
      %p93 = scmp.eq.s32.totalorder %s25, 0
      %p94 = por %p92, %p93
      %s95 = ssub.s32 %s26, %s38
      %p96 = scmp.eq.s32.totalorder %s95, 0
      %s98 = sadd.s32 %s97, 1
      %s99 = scalar_select %p96, %s97, %s98
      %p102 = pneg %p96
      %p103 = scmp.eq.s32.totalorder %s19, 1
      %p104 = por %p102, %p103
      %p105 = scmp.ne.s32.totalorder %s97, %s100
      %p106 = scmp.eq.s32.totalorder %s19, 0
      %p107 = por %p105, %p106
      %p108 = scmp.ne.s32.totalorder %s97, %s100
      %p109 = scmp.eq.s32.totalorder %s24, 1
      %p110 = por %p108, %p109
      %p111 = scmp.ne.s32.totalorder %s100, %s101
      %p112 = scmp.eq.s32.totalorder %s24, 0
      %p113 = por %p111, %p112
      %p114 = scmp.ne.s32.totalorder %s100, %s101
      %p115 = scmp.eq.s32.totalorder %s25, 1
      %p116 = por %p114, %p115
      %p118 = scmp.ne.s32.totalorder %s101, %s117
      %p119 = scmp.eq.s32.totalorder %s25, 0
      %p120 = por %p118, %p119
      %p121 = scmp.le.s32.totalorder 1, %s19
      %p122 = scmp.lt.s32.totalorder %s19, 3
      %p123 = pnand %p121, %p122
      %p124 = pneg %p123
      // Predicated region
      $region9: #{tpu_custom_call.1} parent=5 // pred_check
        _
      $region10: #{tpu_custom_call.1} parent=5 // pred_check_branch
        %126 = sbr.rel (%p123) target = $region12
      $region11: #{tpu_custom_call.1} parent=5 // pred_region
        %s127 = ssub.s32 %s19, 1
      $region12: #{tpu_custom_call.1} parent=5 // pred_fallthru
        _
      %p128 = scmp.lt.s32.totalorder %s19, 2
      // Predicated region
      $region13: #{tpu_custom_call.1} parent=5 // pred_check
        %p129 = pneg %p128
      $region14: #{tpu_custom_call.1} parent=5 // pred_check_branch
        %131 = sbr.rel (%p129) target = $region16
      $region15: #{tpu_custom_call.1} parent=5 // pred_region
        // Predicated region
        $region17: #{tpu_custom_call.1} parent=15 // pred_check
          %p132 = pneg %p53
        $region18: #{tpu_custom_call.1} parent=15 // pred_check_branch
          %134 = sbr.rel (%p132) target = $region20
        $region19: #{tpu_custom_call.1} parent=15 // pred_region
          %s135 = sand.u32 %s43, 1
          %s136 = scalar_lea.sflag [#allocation6], %s135
          %s137 = sand.u32 %s43, 1
          %s138 = smul.addr %s137, 24
          %s139 = scalar_lea.vmem [#allocation5], %s138
          %s140 = sadd.s32 %s26, %s27
          %s142 = ssub.s32 384, 384
          %143 = vsyncadd %s136, %s142
          %s144 = smul.addr %s140, 128
          %s145 = scalar_lea.hbm %s1, %s144
          %s146 = sshll.u32 %s139, 4
          %s147 = int_to_ptr.vmem [resolvable:$true] %s146
          %152 = dma.hbm_to_vmem [thread:$0]  %s145, 384, %s147, %s136, 256, 128, 8
        $region20: #{tpu_custom_call.1} parent=15 // pred_fallthru
          _
        // Predicated region
        $region21: #{tpu_custom_call.1} parent=15 // pred_check
          %p153 = pneg %p81
        $region22: #{tpu_custom_call.1} parent=15 // pred_check_branch
          %155 = sbr.rel (%p153) target = $region24
        $region23: #{tpu_custom_call.1} parent=15 // pred_region
          %s156 = sand.u32 %s71, 1
          %s157 = scalar_lea.sflag [#allocation9], %s156
          %s158 = sand.u32 %s71, 1
          %s159 = smul.addr %s158, 24
          %s160 = scalar_lea.vmem [#allocation8], %s159
          %s161 = sadd.s32 %s26, %s27
          %s163 = ssub.s32 384, 384
          %164 = vsyncadd %s157, %s163
          %s165 = smul.addr %s161, 128
          %s166 = scalar_lea.hbm %s2, %s165
          %s167 = sshll.u32 %s160, 4
          %s168 = int_to_ptr.vmem [resolvable:$true] %s167
          %173 = dma.hbm_to_vmem [thread:$0]  %s166, 384, %s168, %s157, 256, 128, 8
        $region24: #{tpu_custom_call.1} parent=15 // pred_fallthru
          _
      $region16: #{tpu_custom_call.1} parent=5 // pred_fallthru
        _
      %p174 = scmp.le.s32.totalorder 1, %s19
      %p175 = scmp.lt.s32.totalorder %s19, 3
      %p176 = pnand %p174, %p175
      %p177 = pneg %p176
      // Predicated region
      $region25: #{tpu_custom_call.1} parent=5 // pred_check
        _
      $region26: #{tpu_custom_call.1} parent=5 // pred_check_branch
        %179 = sbr.rel (%p176) target = $region28
      $region27: #{tpu_custom_call.1} parent=5 // pred_region
        %s180 = ssub.s32 %s19, 1
        %s181 = sand.u32 %s46, 1
        %s182 = scalar_lea.sflag [#allocation6], %s181
        %s183 = sand.u32 %s46, 1
        %s184 = smul.addr %s183, 24
        %s185 = scalar_lea.vmem [#allocation5], %s184
        // Predicated region
        $region29: #{tpu_custom_call.1} parent=27 // pred_check
          %p186 = pneg %p59
        $region30: #{tpu_custom_call.1} parent=27 // pred_check_branch
          %188 = sbr.rel (%p186) target = $region32
        $region31: #{tpu_custom_call.1} parent=27 // pred_region
          %189 = dma.done %s182, 384
        $region32: #{tpu_custom_call.1} parent=27 // pred_fallthru
          _
        %s190 = sand.u32 %s74, 1
        %s191 = scalar_lea.sflag [#allocation9], %s190
        %s192 = sand.u32 %s74, 1
        %s193 = smul.addr %s192, 24
        %s194 = scalar_lea.vmem [#allocation8], %s193
        // Predicated region
        $region33: #{tpu_custom_call.1} parent=27 // pred_check
          %p195 = pneg %p87
        $region34: #{tpu_custom_call.1} parent=27 // pred_check_branch
          %197 = sbr.rel (%p195) target = $region36
        $region35: #{tpu_custom_call.1} parent=27 // pred_region
          %198 = dma.done %s191, 384
        $region36: #{tpu_custom_call.1} parent=27 // pred_fallthru
          _
        %s199 = sand.u32 %s46, 1
        %s200 = scalar_lea.sflag [#allocation6], %s199
        %s201 = sand.u32 %s46, 1
        %s202 = smul.addr %s201, 24
        %s203 = scalar_lea.vmem [#allocation5], %s202
        %p204 = pneg %p59
        %p205 = pneg %p56
        %s206 = sand.u32 %s74, 1
        %s207 = scalar_lea.sflag [#allocation9], %s206
        %s208 = sand.u32 %s74, 1
        %s209 = smul.addr %s208, 24
        %s210 = scalar_lea.vmem [#allocation8], %s209
        %p211 = pneg %p87
        %p212 = pneg %p84
        %p213 = pneg %p113
        %p214 = pneg %p110
        %s215 = sand.u32 %s100, 1
        %s216 = scalar_lea.sflag [#allocation7], %s215
        %s217 = sand.u32 %s100, 1
        %s218 = smul.addr %s217, 8
        %s219 = scalar_lea.vmem [#allocation10], %s218
        %s220 = sadd.s32 %s28, %s29
        %s221 = sadd.s32 %s28, %s29
        %p222 = scmp.eq.s32.totalorder %s29, 0
        // Predicated region
        $region37: #{tpu_custom_call.1} parent=27 // pred_check
          %p223 = pneg %p222
        $region38: #{tpu_custom_call.1} parent=27 // pred_check_branch
          %225 = sbr.rel (%p223) target = $region40
        $region39: #{tpu_custom_call.1} parent=27 // pred_region
          %s226 = scalar_lea.smem [#allocation2], 0
          %227 = sst [smem:[%s226]] 0.0
          %s228 = scalar_lea.smem [#allocation2], 1
          %229 = sst [smem:[%s228]] 0.0
        $region40: #{tpu_custom_call.1} parent=27 // pred_fallthru
          _
        %v230 = vld [vmem:[%s185] sm:$0xff]
        %s231 = scalar_lea.vmem %s185, 8 [#allocation5]
        %v232 = vld [vmem:[%s231] sm:$0xff]
        %s233 = scalar_lea.vmem %s185, 16 [#allocation5]
        %v234 = vld [vmem:[%s233] sm:$0xff]
        %v235 = vld [vmem:[%s194] sm:$0xff]
        %s236 = scalar_lea.vmem %s194, 8 [#allocation8]
        %v237 = vld [vmem:[%s236] sm:$0xff]
        %s238 = scalar_lea.vmem %s194, 16 [#allocation8]
        %v239 = vld [vmem:[%s238] sm:$0xff]
        %s240 = sadd.s32 %s28, %s29
        %v241 = vlaneseq
        %v242 = vshrl.u32 %v241, 7
        %v243 = vlaneseq
        %v244 = vand.u32 %v243, 127
        %s245 = smul.u32 %s240, 8
        %v246 = vstv %s245
        %v247 = vadd.s32 %v246, %v242
        %v248 = vmul.u32 %v247, 128
        %v249 = vadd.s32 %v248, %v244
        %s250 = sld [smem:[#allocation4]]
        %v251 = vstv %s250
        %vm252 = vcmp.lt.s32.totalorder %v249, %v251
        %vm253 = vcmp.ne.f32.partialorder %v235, %v235
        %vm254 = vcmp.ne.f32.partialorder %v237, %v237
        %vm255 = vmor %vm253, %vm254
        %vm256 = vcmp.ne.f32.partialorder %v239, %v239
        %vm257 = vmor %vm255, %vm256
        %vm258 = vmxor %vm257, 1
        %vm259 = vmand %vm252, %vm258
        %v260 = vsel %vm259, 1, 0
        %v261 = vcvt.s32.f32 %v260
        %v262 = vsel %vm259, %v235, 0.0
        %v263 = vsub.f32 %v230, %v262
        %v264 = vsel %vm259, %v237, 0.0
        %v265 = vsub.f32 %v232, %v264
        %v266 = vsel %vm259, %v239, 0.0
        %v267 = vsub.f32 %v234, %v266
        %v268 = vmul.f32 %v263, %v263
        %v269 = vmul.f32 %v265, %v265
        %v270 = vadd.f32 %v268, %v269
        %v271 = vmul.f32 %v267, %v267
        %v272 = vadd.f32 %v270, %v271
        %v273 = vrsqrt.pop %v272
        %v274 = vmul.f32 %v272, %v273
        %vm275 = vcmp.eq.f32.partialorder %v272, inf
        %v276 = vsel %vm275, %v272, %v274
        %vm277 = vcmp.eq.f32.partialorder %v272, 0.0
        %v278 = vand.u32 %v272, 2147483648
        %v279 = vsel %vm277, %v278, %v276
        %v280 = vmul.f32 %v279, %v261
        %s281 = sld [smem:[#allocation2]]
        %282 = vadd.xlane.f32.xlu0 %v280
        %v283 = vpop.xlane.xlu0 %282
        %v284 = vrot.slane %v283, 4
        %v285 = vadd.f32 %v283, %v284
        %v286 = vrot.slane %v285, 2
        %v287 = vadd.f32 %v285, %v286
        %v288 = vrot.slane %v287, 1
        %v289 = vadd.f32 %v287, %v288
        %s290 = vtos %v289
        %s291 = sadd.f32 %s281, %s290
        %s292 = scalar_lea.smem [#allocation2], 0
        %293 = sst [smem:[%s292]] %s291
        %s294 = sld [smem:[#allocation2 + $0x1]]
        %295 = vadd.xlane.f32.xlu0 %v261
        %v296 = vpop.xlane.xlu0 %295
        %v297 = vrot.slane %v296, 4
        %v298 = vadd.f32 %v296, %v297
        %v299 = vrot.slane %v298, 2
        %v300 = vadd.f32 %v298, %v299
        %v301 = vrot.slane %v300, 1
        %v302 = vadd.f32 %v300, %v301
        %s303 = vtos %v302
        %s304 = sadd.f32 %s294, %s303
        %s305 = scalar_lea.smem [#allocation2], 1
        %306 = sst [smem:[%s305]] %s304
        // Predicated region
        $region41: #{tpu_custom_call.1} parent=27 // pred_check
          %p307 = pneg %p222
        $region42: #{tpu_custom_call.1} parent=27 // pred_check_branch
          %309 = sbr.rel (%p307) target = $region44
        $region43: #{tpu_custom_call.1} parent=27 // pred_region
          %vm310 = vcmp.eq.s32.totalorder %v242, 0
          %s311 = sld [smem:[#allocation2]]
          %vm312 = vcmp.eq.s32.totalorder %v242, 1
          %s313 = sld [smem:[#allocation2 + $0x1]]
          %v314 = vstv %s313
          %v315 = vsel %vm312, %v314, 0.0
          %v316 = vstv %s311
          %v317 = vsel %vm310, %v316, %v315
          %318 = vst [vmem:[%s219] sm:$0xff] %v317
        $region44: #{tpu_custom_call.1} parent=27 // pred_fallthru
          _
        %s319 = sand.u32 %s100, 1
        %s320 = scalar_lea.sflag [#allocation7], %s319
        %s321 = sand.u32 %s100, 1
        %s322 = smul.addr %s321, 8
        %s323 = scalar_lea.vmem [#allocation10], %s322
        // Predicated region
        $region45: #{tpu_custom_call.1} parent=27 // pred_check
          %p324 = pneg %p110
        $region46: #{tpu_custom_call.1} parent=27 // pred_check_branch
          %326 = sbr.rel (%p324) target = $region48
        $region47: #{tpu_custom_call.1} parent=27 // pred_region
          %s328 = ssub.s32 128, 128
          %329 = vsyncadd %s320, %s328
          %s330 = smul.addr %s28, 128
          %s331 = scalar_lea.hbm %s3, %s330
          %s333 = sshll.u32 %s323, 4
          %s334 = int_to_ptr.vmem [resolvable:$true] %s333
          %336 = dma.vmem_to_hbm [thread:$0]  %s334, 128, %s331, %s320
        $region48: #{tpu_custom_call.1} parent=27 // pred_fallthru
          _
      $region28: #{tpu_custom_call.1} parent=5 // pred_fallthru
        _
      %p337 = scmp.le.s32.totalorder 2, %s19
      // Predicated region
      $region49: #{tpu_custom_call.1} parent=5 // pred_check
        %p338 = pneg %p337
      $region50: #{tpu_custom_call.1} parent=5 // pred_check_branch
        %340 = sbr.rel (%p338) target = $region52
      $region51: #{tpu_custom_call.1} parent=5 // pred_region
        %s341 = ssub.s32 %s19, 2
        // Predicated region
        $region53: #{tpu_custom_call.1} parent=51 // pred_check
          %p342 = pneg %p116
        $region54: #{tpu_custom_call.1} parent=51 // pred_check_branch
          %344 = sbr.rel (%p342) target = $region56
        $region55: #{tpu_custom_call.1} parent=51 // pred_region
          %s345 = sand.u32 %s101, 1
          %s346 = scalar_lea.sflag [#allocation7], %s345
          %s347 = sand.u32 %s101, 1
          %s348 = smul.addr %s347, 8
          %s349 = scalar_lea.vmem [#allocation10], %s348
          %350 = dma.done %s346, 128
        $region56: #{tpu_custom_call.1} parent=51 // pred_fallthru
          _
      $region52: #{tpu_custom_call.1} parent=5 // pred_fallthru
        _
    $region6: #{tpu_custom_call.1} parent=1 // loop_footer
      %s23 = sadd.s32 1, %s19
    $region7: #{tpu_custom_call.1} parent=1 // loop_footer_branch
      %18 = sbr.rel target = $region3
    $region8: #{tpu_custom_call.1} parent=1 // loop_exit
      _
    %351 = vsyncpa [#allocation6], 1
    %s352 = scalar_lea.sflag [#allocation6], 1
    %353 = vsyncpa %s352, 1
    %354 = vsyncpa [#allocation9], 1
    %s355 = scalar_lea.sflag [#allocation9], 1
    %356 = vsyncpa %s355, 1
    %357 = vsyncpa [#allocation7], 1
    %s358 = scalar_lea.sflag [#allocation7], 1
    %359 = vsyncpa %s358, 1

</llo_original>
